<compile_context>
chip_gen: v7x
topology: tpu7x:2x2x1
jax: 0.10.0
libtpu: 0.0.40
codegen_flags: <defaults>
</compile_context>

<pallas_src>
import functools

import jax
import jax.numpy as jnp
from jax.experimental import pallas as pl
from jax.experimental.pallas import tpu as pltpu

_LANE = 128
_SUB = 8
_MIB = 1024 * 1024


def _cdiv(a, b):
    return -(-a // b)


def _vmem_capacity_bytes():
    try:
        return int(pltpu.get_tpu_info().vmem_capacity_bytes)
    except Exception:
        return 64 * _MIB  # conservative default (v7x per-core VMEM)


def _complex_bitcast_supported():
    """True iff this JAX can reinterpret complex64 <-> f32 pairs (no copy)."""
    try:
        z = jnp.zeros((8,), jnp.complex64)
        f = jax.lax.bitcast_convert_type(z, jnp.float32)
        c = jax.lax.bitcast_convert_type(f, jnp.complex64)
        jax.block_until_ready((f, c))
        return f.shape == (8, 2) and c.shape == (8,)
    except Exception:
        return False


_HAS_COMPLEX_BITCAST = _complex_bitcast_supported()


@functools.lru_cache(maxsize=None)
def _plan(rows8, n_planes):
    """Pick (block_rows, grid, vmem_limit) for n_planes (rows8, 128) f32 planes."""
    cap = _vmem_capacity_bytes()
    if cap >= 96 * _MIB:                 # 128-MiB VMEM parts (v5e / v6e)
        budget = 96 * _MIB
        blk_cap_bytes = 16 * _MIB
    else:                                # 64-MiB parts (v7x): stay conservative
        budget = min(48 * _MIB, (cap * 3) // 4)
        blk_cap_bytes = 4 * _MIB
    live_blocks = 4 * n_planes           # (in + out) double-buffered, per plane
    block_bytes = max(_SUB * _LANE * 4,
                      min(blk_cap_bytes, budget // (live_blocks + 2)))
    bm_cap = max(_SUB, (block_bytes // (_LANE * 4)) // _SUB * _SUB)

    grid = max(1, _cdiv(rows8, bm_cap))
    if grid == 1 and rows8 >= 2 * _SUB:
        # >= 2 'parallel' steps so both v7x TensorCores get work; costs only
        # one ~0.35us extra pipeline step on single-core v5e/v6e.
        grid = 2
    elif grid > 1 and grid % 2 == 1:
        # Try to even out the grid so v7x's two cores split it evenly.
        bm_try = _cdiv(_cdiv(rows8, grid + 1), _SUB) * _SUB
        if bm_try >= _SUB and _cdiv(rows8, bm_try) % 2 == 0:
            grid = _cdiv(rows8, bm_try)
    bm = max(_SUB, _cdiv(_cdiv(rows8, grid), _SUB) * _SUB)
    grid = _cdiv(rows8, bm)
    return bm, grid, budget


def _mish(v):
    """mish(v) = v * tanh(softplus(v)) with a single transcendental.

    tanh(log1p(e^v)) = (t^2 + 2t) / (t^2 + 2t + 2) with t = e^v.  Branchless
    and overflow-free via u = exp(-|v|):
      v <= 0 (t = u):    (u^2 + 2u) / (u^2 + 2u + 2)
      v >  0 (t = 1/u):  (2u + 1)   / (2u^2 + 2u + 1)
    Exact divide (not approx reciprocal) keeps us well inside 1e-5 tolerance.
    """
    u = jnp.exp(-jnp.abs(v))             # EUP, the only transcendental
    u2 = u * u
    pos = v > 0
    num = jnp.where(pos, 2.0 * u + 1.0, u2 + 2.0 * u)
    den = jnp.where(pos, 2.0 * u2 + 2.0 * u + 1.0, u2 + 2.0 * u + 2.0)
    return v * (num / den)


def _mish_kernel(*refs):
    # refs = (*in_refs, *out_refs); purely elementwise.
    n = len(refs) // 2
    for i in range(n):
        refs[n + i][...] = _mish(refs[i][...])


def _run_mish_planes(planes):
    """Apply mish elementwise to each flat f32 plane with a single pallas_call."""
    n = len(planes)
    total = planes[0].shape[0]
    rows = max(1, _cdiv(total, _LANE))
    rows8 = _cdiv(rows, _SUB) * _SUB
    padded = rows8 * _LANE
    bm, grid, vmem_limit = _plan(rows8, n)

    def prep(a):
        if padded != total:               # pad only when misaligned; mish(0)=0
            a = jnp.pad(a, (0, padded - total))
        return a.reshape(rows8, _LANE)

    ins = [prep(a) for a in planes]
    n_elems = n * padded

    outs = pl.pallas_call(
        _mish_kernel,
        out_shape=tuple(jax.ShapeDtypeStruct((rows8, _LANE), jnp.float32)
                        for _ in range(n)),
        grid_spec=pltpu.PrefetchScalarGridSpec(
            num_scalar_prefetch=0,
            grid=(grid,),
            in_specs=[pl.BlockSpec((bm, _LANE), lambda i: (i, 0))
                      for _ in range(n)],
            out_specs=tuple(pl.BlockSpec((bm, _LANE), lambda i: (i, 0))
                            for _ in range(n)),
        ),
        compiler_params=pltpu.CompilerParams(
            dimension_semantics=("parallel",),
            vmem_limit_bytes=vmem_limit,
        ),
        cost_estimate=pl.CostEstimate(
            flops=12 * n_elems,
            transcendentals=n_elems,
            bytes_accessed=2 * n_elems * 4,
        ),
    )(*ins)
    if not isinstance(outs, (tuple, list)):
        outs = (outs,)

    def unprep(o):
        o = o.reshape(-1)
        if padded != total:
            o = o[:total]
        return o

    return [unprep(o) for o in outs]


@jax.jit
def mish_complex(x):
    """Pallas implementation of MishComplex.forward (output is complex64)."""
    shape = x.shape
    x = x.astype(jnp.complex64)

    if _HAS_COMPLEX_BITCAST:
        # One interleaved f32 view of the complex buffer: mish is applied
        # identically & elementwise to real and imag, so no de-interleave is
        # needed and the wrapper adds no extra HBM passes.
        flat = jax.lax.bitcast_convert_type(x, jnp.float32).reshape(-1)
        (y,) = _run_mish_planes([flat])
        return jax.lax.bitcast_convert_type(y.reshape(shape + (2,)),
                                            jnp.complex64)

    # TODO(synk): this JAX version rejects complex in lax.bitcast_convert_type
    # and Pallas/Mosaic has no complex refs, so the real/imag split and the
    # complex repack remain as XLA wrapper passes here.
    re = jnp.real(x).reshape(-1)
    im = jnp.imag(x).reshape(-1)
    yre, yim = _run_mish_planes([re, im])
    return jax.lax.complex(yre.reshape(shape),
                           yim.reshape(shape)).astype(jnp.complex64)


def _reference(x):
    # Pure-JAX reference matching the PyTorch module exactly.
    def mish(v):
        return v * jnp.tanh(jax.nn.softplus(v))
    return (mish(jnp.real(x)) + 1j * mish(jnp.imag(x))).astype(jnp.complex64)


if __name__ == "__main__":
    key = jax.random.PRNGKey(0)
    kre, kim = jax.random.split(key)
    shape = (2, 4, 16, 16)  # NCHW-style, consistent with the module's usage
    xr = jax.random.normal(kre, shape, dtype=jnp.float32)
    xi = jax.random.normal(kim, shape, dtype=jnp.float32)
    x = jax.lax.complex(xr, xi)  # complex64 input, as the module expects

    out = jax.block_until_ready(mish_complex(x))
    ref = _reference(x)

    assert out.shape == x.shape
    assert out.dtype == jnp.complex64
    assert jnp.allclose(out, ref, atol=1e-5, rtol=1e-5), "mismatch vs reference"

    print("KERNEL_OK")
</pallas_src>

<mosaic_0001>
module attributes {stable_mosaic.version = 11 : i64} {
  func.func @_mish_kernel(%arg0: i32, %arg1: memref<8x128xf32, #tpu.memory_space<vmem>>, %arg2: memref<8x128xf32, #tpu.memory_space<vmem>>, %arg3: memref<8x128xf32, #tpu.memory_space<vmem>>, %arg4: memref<8x128xf32, #tpu.memory_space<vmem>>) attributes {dimension_semantics = [#tpu.dimension_semantics<parallel>], iteration_bounds = array<i64: 2>, scalar_prefetch = 0 : i64, scratch_operands = 0 : i64, tpu.core_type = #tpu.core_type<tc>, window_params = [{transform_indices = @transform_0, window_bounds = array<i64: 8, 128>}, {transform_indices = @transform_1, window_bounds = array<i64: 8, 128>}, {transform_indices = @transform_2, window_bounds = array<i64: 8, 128>}, {transform_indices = @transform_3, window_bounds = array<i64: 8, 128>}]} {
    %c0 = arith.constant 0 : index
    %c0_0 = arith.constant 0 : index
    %0 = vector.load %arg1[%c0, %c0_0] : memref<8x128xf32, #tpu.memory_space<vmem>>, vector<8x128xf32>
    %1 = math.absf %0 : vector<8x128xf32>
    %cst = arith.constant 0.000000e+00 : f32
    %2 = vector.broadcast %cst : f32 to vector<8x128xf32>
    %3 = arith.subf %2, %1 : vector<8x128xf32>
    %4 = math.exp %3 : vector<8x128xf32>
    %5 = arith.mulf %4, %4 : vector<8x128xf32>
    %cst_1 = arith.constant 0.000000e+00 : f32
    %6 = vector.broadcast %cst_1 : f32 to vector<8x128xf32>
    %7 = arith.cmpf ogt, %0, %6 : vector<8x128xf32>
    %cst_2 = arith.constant 2.000000e+00 : f32
    %8 = vector.broadcast %cst_2 : f32 to vector<8x128xf32>
    %9 = arith.mulf %8, %4 : vector<8x128xf32>
    %cst_3 = arith.constant 1.000000e+00 : f32
    %10 = vector.broadcast %cst_3 : f32 to vector<8x128xf32>
    %11 = arith.addf %9, %10 : vector<8x128xf32>
    %cst_4 = arith.constant 2.000000e+00 : f32
    %12 = vector.broadcast %cst_4 : f32 to vector<8x128xf32>
    %13 = arith.mulf %12, %4 : vector<8x128xf32>
    %14 = arith.addf %5, %13 : vector<8x128xf32>
    %15 = arith.select %7, %11, %14 : vector<8x128xi1>, vector<8x128xf32>
    %cst_5 = arith.constant 2.000000e+00 : f32
    %16 = vector.broadcast %cst_5 : f32 to vector<8x128xf32>
    %17 = arith.mulf %16, %5 : vector<8x128xf32>
    %cst_6 = arith.constant 2.000000e+00 : f32
    %18 = vector.broadcast %cst_6 : f32 to vector<8x128xf32>
    %19 = arith.mulf %18, %4 : vector<8x128xf32>
    %20 = arith.addf %17, %19 : vector<8x128xf32>
    %cst_7 = arith.constant 1.000000e+00 : f32
    %21 = vector.broadcast %cst_7 : f32 to vector<8x128xf32>
    %22 = arith.addf %20, %21 : vector<8x128xf32>
    %cst_8 = arith.constant 2.000000e+00 : f32
    %23 = vector.broadcast %cst_8 : f32 to vector<8x128xf32>
    %24 = arith.mulf %23, %4 : vector<8x128xf32>
    %25 = arith.addf %5, %24 : vector<8x128xf32>
    %cst_9 = arith.constant 2.000000e+00 : f32
    %26 = vector.broadcast %cst_9 : f32 to vector<8x128xf32>
    %27 = arith.addf %25, %26 : vector<8x128xf32>
    %28 = arith.select %7, %22, %27 : vector<8x128xi1>, vector<8x128xf32>
    %29 = arith.divf %15, %28 : vector<8x128xf32>
    %30 = arith.mulf %0, %29 : vector<8x128xf32>
    %c0_10 = arith.constant 0 : index
    %c0_11 = arith.constant 0 : index
    %31 = vector.load %arg3[%c0_10, %c0_11] : memref<8x128xf32, #tpu.memory_space<vmem>>, vector<8x128xf32>
    tpu.vector_store %arg3[%c0_10, %c0_11], %30 {strides = array<i32>} : memref<8x128xf32, #tpu.memory_space<vmem>>, vector<8x128xf32>,
    %c0_12 = arith.constant 0 : index
    %c0_13 = arith.constant 0 : index
    %32 = vector.load %arg2[%c0_12, %c0_13] : memref<8x128xf32, #tpu.memory_space<vmem>>, vector<8x128xf32>
    %33 = math.absf %32 : vector<8x128xf32>
    %cst_14 = arith.constant 0.000000e+00 : f32
    %34 = vector.broadcast %cst_14 : f32 to vector<8x128xf32>
    %35 = arith.subf %34, %33 : vector<8x128xf32>
    %36 = math.exp %35 : vector<8x128xf32>
    %37 = arith.mulf %36, %36 : vector<8x128xf32>
    %cst_15 = arith.constant 0.000000e+00 : f32
    %38 = vector.broadcast %cst_15 : f32 to vector<8x128xf32>
    %39 = arith.cmpf ogt, %32, %38 : vector<8x128xf32>
    %cst_16 = arith.constant 2.000000e+00 : f32
    %40 = vector.broadcast %cst_16 : f32 to vector<8x128xf32>
    %41 = arith.mulf %40, %36 : vector<8x128xf32>
    %cst_17 = arith.constant 1.000000e+00 : f32
    %42 = vector.broadcast %cst_17 : f32 to vector<8x128xf32>
    %43 = arith.addf %41, %42 : vector<8x128xf32>
    %cst_18 = arith.constant 2.000000e+00 : f32
    %44 = vector.broadcast %cst_18 : f32 to vector<8x128xf32>
    %45 = arith.mulf %44, %36 : vector<8x128xf32>
    %46 = arith.addf %37, %45 : vector<8x128xf32>
    %47 = arith.select %39, %43, %46 : vector<8x128xi1>, vector<8x128xf32>
    %cst_19 = arith.constant 2.000000e+00 : f32
    %48 = vector.broadcast %cst_19 : f32 to vector<8x128xf32>
    %49 = arith.mulf %48, %37 : vector<8x128xf32>
    %cst_20 = arith.constant 2.000000e+00 : f32
    %50 = vector.broadcast %cst_20 : f32 to vector<8x128xf32>
    %51 = arith.mulf %50, %36 : vector<8x128xf32>
    %52 = arith.addf %49, %51 : vector<8x128xf32>
    %cst_21 = arith.constant 1.000000e+00 : f32
    %53 = vector.broadcast %cst_21 : f32 to vector<8x128xf32>
    %54 = arith.addf %52, %53 : vector<8x128xf32>
    %cst_22 = arith.constant 2.000000e+00 : f32
    %55 = vector.broadcast %cst_22 : f32 to vector<8x128xf32>
    %56 = arith.mulf %55, %36 : vector<8x128xf32>
    %57 = arith.addf %37, %56 : vector<8x128xf32>
    %cst_23 = arith.constant 2.000000e+00 : f32
    %58 = vector.broadcast %cst_23 : f32 to vector<8x128xf32>
    %59 = arith.addf %57, %58 : vector<8x128xf32>
    %60 = arith.select %39, %54, %59 : vector<8x128xi1>, vector<8x128xf32>
    %61 = arith.divf %47, %60 : vector<8x128xf32>
    %62 = arith.mulf %32, %61 : vector<8x128xf32>
    %c0_24 = arith.constant 0 : index
    %c0_25 = arith.constant 0 : index
    %63 = vector.load %arg4[%c0_24, %c0_25] : memref<8x128xf32, #tpu.memory_space<vmem>>, vector<8x128xf32>
    tpu.vector_store %arg4[%c0_24, %c0_25], %62 {strides = array<i32>} : memref<8x128xf32, #tpu.memory_space<vmem>>, vector<8x128xf32>,
    return
  }
  func.func @transform_0(%arg0: i32) -> (i32, i32) {
    %c0_i32 = arith.constant 0 : i32
    %c0_i32_0 = arith.constant 0 : i32
    return %arg0, %c0_i32 : i32, i32
  }
  func.func @transform_1(%arg0: i32) -> (i32, i32) {
    %c0_i32 = arith.constant 0 : i32
    %c0_i32_0 = arith.constant 0 : i32
    return %arg0, %c0_i32 : i32, i32
  }
  func.func @transform_2(%arg0: i32) -> (i32, i32) {
    %c0_i32 = arith.constant 0 : i32
    %c0_i32_0 = arith.constant 0 : i32
    return %arg0, %c0_i32 : i32, i32
  }
  func.func @transform_3(%arg0: i32) -> (i32, i32) {
    %c0_i32 = arith.constant 0 : i32
    %c0_i32_0 = arith.constant 0 : i32
    return %arg0, %c0_i32 : i32, i32
  }
}

</mosaic_0001>

<llo_original>
// kernel: custom-call.1
$region0: #{custom-call.1}
  %s0 = inlined_call_operand.hbm [shape: c64[2,4,16,16], index: 0, kind: input, shape index: {}]
  %s1 = inlined_call_operand.vmem [shape: f32[2,4,16,16], index: 1, kind: output, shape index: {}]
  %s2 = scalar_lea.hbm %s0, 2048
  $region1: #{custom-call.1} parent=0
    #allocation0 [shape = 's32[1]{0}', space=sflag, size = 0x4, scoped, tag = 'scoped memory for custom-call.1']
    %3 = vsyncpa [#allocation0], 0
    %s4 = sshll.u32 %s1, 4
    %s5 = int_to_ptr.vmem [resolvable:$true] %s4
    %7 = dma.hbm_to_vmem [thread:$0]  %s2, 2048, %s5, [#allocation0]
    %8 = dma.done [#allocation0], 2048
    %9 = vsyncpa [#allocation0], 1

// kernel: custom-call
$region0: #{custom-call}
  %s0 = inlined_call_operand.hbm [shape: c64[2,4,16,16], index: 0, kind: input, shape index: {}]
  %s1 = inlined_call_operand.vmem [shape: f32[2,4,16,16], index: 1, kind: output, shape index: {}]
  $region1: #{custom-call} parent=0
    #allocation0 [shape = 's32[1]{0}', space=sflag, size = 0x4, scoped, tag = 'scoped memory for custom-call']
    %2 = vsyncpa [#allocation0], 0
    %s3 = sshll.u32 %s1, 4
    %s4 = int_to_ptr.vmem [resolvable:$true] %s3
    %6 = dma.hbm_to_vmem [thread:$0]  %s0, 2048, %s4, [#allocation0]
    %7 = dma.done [#allocation0], 2048
    %8 = vsyncpa [#allocation0], 1

// kernel: custom-call.2
$region0: #{custom-call.2}
  %s0 = inlined_call_operand.vmem [shape: f32[2,4,16,16], index: 0, kind: input, shape index: {}]
  %s1 = inlined_call_operand.vmem [shape: f32[2,4,16,16], index: 1, kind: input, shape index: {}]
  %s2 = inlined_call_operand.hbm [shape: c64[2,4,16,16], index: 2, kind: output, shape index: {}]
  %s3 = scalar_lea.hbm %s2, 2048
  $region1: #{custom-call.2} parent=0
    #allocation0 [shape = 's32[1]{0}', space=sflag, size = 0x4, scoped, tag = 'scoped memory for custom-call.2']
    %4 = vsyncpa [#allocation0], 0
    %s5 = sshll.u32 %s0, 4
    %s6 = int_to_ptr.vmem [resolvable:$true] %s5
    %8 = dma.vmem_to_hbm [thread:$0]  %s6, 2048, %s2, [#allocation0]
    %9 = dma.done [#allocation0], 2048
    %10 = vsyncpa [#allocation0], 1
  $region2: #{custom-call.2} parent=0
    #allocation1 [shape = 's32[1]{0}', space=sflag, size = 0x4, scoped, tag = 'scoped memory for custom-call.2']
    %11 = vsyncpa [#allocation1], 0
    %s12 = sshll.u32 %s1, 4
    %s13 = int_to_ptr.vmem [resolvable:$true] %s12
    %15 = dma.vmem_to_hbm [thread:$0]  %s13, 2048, %s3, [#allocation1]
    %16 = dma.done [#allocation1], 2048
    %17 = vsyncpa [#allocation1], 1

// kernel: mish_complex.1
$region0: #{mish_complex.1}
  #allocation0 [shape = 'u32[]', space=smem, size = 0x4, offset = 0x4, fixed_abs, tag = 'smem constant byte address 0x4 - core index']
  #allocation1 [shape = 'u32[144,128]{1,0:T(1,128)}', space=vmem, size = 0x12000, scoped, tag = 'internal scratch']
  %s0 = inlined_call_operand.vmem [shape: f32[16,128], index: 0, kind: input, shape index: {}]
  %s1 = inlined_call_operand.vmem [shape: f32[16,128], index: 1, kind: input, shape index: {}]
  %s2 = inlined_call_operand.vmem [shape: f32[16,128], index: 2, kind: output, shape index: {0}]
  %s3 = inlined_call_operand.vmem [shape: f32[16,128], index: 3, kind: output, shape index: {1}]
  %4 = xla_tuple %s2, %s3
  %s5 = sld [smem:[#allocation0]]
  $region49: #{mish_complex.1} parent=0
    _
  %s7 = ssub.s32 1, %s5
  %s8 = scalar_select 0, %s7, %s5
  loop: start=0, step=1, limit=4
  $region2: #{mish_complex.1} parent=0 // loop_pre_header
    _
  $region3: #{mish_complex.1} parent=0 // loop_header
    %s10 = sphi 0, %s14
    %p11 = scmp.ge.s32.totalorder %s10, 4
    %s20 = sphi 0, %s22
    %s23 = sphi 0, %s20
    %s24 = sphi 0, %s23
    %s40 = sphi 0, %s24
    %s46 = sphi 0, %s48
    %s49 = sphi 0, %s46
    %s50 = sphi 0, %s49
    %s66 = sphi 0, %s50
    %s72 = sphi 0, %s74
    %s75 = sphi 0, %s72
    %s76 = sphi 0, %s75
    %s92 = sphi 0, %s76
    %s98 = sphi 0, %s100
    %s101 = sphi 0, %s98
    %s102 = sphi 0, %s101
    %s118 = sphi 0, %s102
  $region4: #{mish_complex.1} parent=0 // loop_header_branch
    %13 = sbr.rel (%p11) target = $region8
  $region5: #{mish_complex.1} parent=0 // loop_body
    %s15 = ssub.s32 %s10, 1
    %s16 = ssub.s32 %s10, 2
    %s17 = sadd.s32 %s10, 1
    %s18 = ssub.s32 %s10, %s17
    %p19 = scmp.eq.s32.totalorder %s18, 0
    %s21 = sadd.s32 %s20, 1
    %s22 = scalar_select %p19, %s20, %s21
    %p25 = pneg %p19
    %p26 = scmp.eq.s32.totalorder %s10, 1
    %p27 = por %p25, %p26
    %p28 = scmp.ne.s32.totalorder %s20, %s23
    %p29 = scmp.eq.s32.totalorder %s10, 0
    %p30 = por %p28, %p29
    %p31 = scmp.ne.s32.totalorder %s20, %s23
    %p32 = scmp.eq.s32.totalorder %s15, 1
    %p33 = por %p31, %p32
    %p34 = scmp.ne.s32.totalorder %s23, %s24
    %p35 = scmp.eq.s32.totalorder %s15, 0
    %p36 = por %p34, %p35
    %p37 = scmp.ne.s32.totalorder %s23, %s24
    %p38 = scmp.eq.s32.totalorder %s16, 1
    %p39 = por %p37, %p38
    %p41 = scmp.ne.s32.totalorder %s24, %s40
    %p42 = scmp.eq.s32.totalorder %s16, 0
    %p43 = por %p41, %p42
    %s44 = ssub.s32 %s10, %s17
    %p45 = scmp.eq.s32.totalorder %s44, 0
    %s47 = sadd.s32 %s46, 1
    %s48 = scalar_select %p45, %s46, %s47
    %p51 = pneg %p45
    %p52 = scmp.eq.s32.totalorder %s10, 1
    %p53 = por %p51, %p52
    %p54 = scmp.ne.s32.totalorder %s46, %s49
    %p55 = scmp.eq.s32.totalorder %s10, 0
    %p56 = por %p54, %p55
    %p57 = scmp.ne.s32.totalorder %s46, %s49
    %p58 = scmp.eq.s32.totalorder %s15, 1
    %p59 = por %p57, %p58
    %p60 = scmp.ne.s32.totalorder %s49, %s50
    %p61 = scmp.eq.s32.totalorder %s15, 0
    %p62 = por %p60, %p61
    %p63 = scmp.ne.s32.totalorder %s49, %s50
    %p64 = scmp.eq.s32.totalorder %s16, 1
    %p65 = por %p63, %p64
    %p67 = scmp.ne.s32.totalorder %s50, %s66
    %p68 = scmp.eq.s32.totalorder %s16, 0
    %p69 = por %p67, %p68
    %s70 = ssub.s32 %s10, %s17
    %p71 = scmp.eq.s32.totalorder %s70, 0
    %s73 = sadd.s32 %s72, 1
    %s74 = scalar_select %p71, %s72, %s73
    %p77 = pneg %p71
    %p78 = scmp.eq.s32.totalorder %s10, 1
    %p79 = por %p77, %p78
    %p80 = scmp.ne.s32.totalorder %s72, %s75
    %p81 = scmp.eq.s32.totalorder %s10, 0
    %p82 = por %p80, %p81
    %p83 = scmp.ne.s32.totalorder %s72, %s75
    %p84 = scmp.eq.s32.totalorder %s15, 1
    %p85 = por %p83, %p84
    %p86 = scmp.ne.s32.totalorder %s75, %s76
    %p87 = scmp.eq.s32.totalorder %s15, 0
    %p88 = por %p86, %p87
    %p89 = scmp.ne.s32.totalorder %s75, %s76
    %p90 = scmp.eq.s32.totalorder %s16, 1
    %p91 = por %p89, %p90
    %p93 = scmp.ne.s32.totalorder %s76, %s92
    %p94 = scmp.eq.s32.totalorder %s16, 0
    %p95 = por %p93, %p94
    %s96 = ssub.s32 %s10, %s17
    %p97 = scmp.eq.s32.totalorder %s96, 0
    %s99 = sadd.s32 %s98, 1
    %s100 = scalar_select %p97, %s98, %s99
    %p103 = pneg %p97
    %p104 = scmp.eq.s32.totalorder %s10, 1
    %p105 = por %p103, %p104
    %p106 = scmp.ne.s32.totalorder %s98, %s101
    %p107 = scmp.eq.s32.totalorder %s10, 0
    %p108 = por %p106, %p107
    %p109 = scmp.ne.s32.totalorder %s98, %s101
    %p110 = scmp.eq.s32.totalorder %s15, 1
    %p111 = por %p109, %p110
    %p112 = scmp.ne.s32.totalorder %s101, %s102
    %p113 = scmp.eq.s32.totalorder %s15, 0
    %p114 = por %p112, %p113
    %p115 = scmp.ne.s32.totalorder %s101, %s102
    %p116 = scmp.eq.s32.totalorder %s16, 1
    %p117 = por %p115, %p116
    %p119 = scmp.ne.s32.totalorder %s102, %s118
    %p120 = scmp.eq.s32.totalorder %s16, 0
    %p121 = por %p119, %p120
    %p122 = scmp.le.s32.totalorder 1, %s10
    %p123 = scmp.lt.s32.totalorder %s10, 3
    %p124 = pnand %p122, %p123
    %p125 = pneg %p124
    // Predicated region
    $region9: #{mish_complex.1} parent=5 // pred_check
      _
    $region10: #{mish_complex.1} parent=5 // pred_check_branch
      %127 = sbr.rel (%p124) target = $region12
    $region11: #{mish_complex.1} parent=5 // pred_region
      %s128 = ssub.s32 %s10, 1
    $region12: #{mish_complex.1} parent=5 // pred_fallthru
      _
    %p129 = scmp.lt.s32.totalorder %s10, 2
    // Predicated region
    $region13: #{mish_complex.1} parent=5 // pred_check
      %p130 = pneg %p129
    $region14: #{mish_complex.1} parent=5 // pred_check_branch
      %132 = sbr.rel (%p130) target = $region16
    $region15: #{mish_complex.1} parent=5 // pred_region
      // Predicated region
      $region17: #{mish_complex.1} parent=15 // pred_check
        %p133 = pneg %p30
      $region18: #{mish_complex.1} parent=15 // pred_check_branch
        %135 = sbr.rel (%p133) target = $region20
      $region19: #{mish_complex.1} parent=15 // pred_region
        %p136 = scmp.lt.s32.totalorder %s10, 1
        %s137 = scalar_select %p136, %s10, 1
        %s138 = smul.addr %s137, 8
        %s139 = scalar_lea.vmem %s0, %s138
      $region20: #{mish_complex.1} parent=15 // pred_fallthru
        _
      // Predicated region
      $region21: #{mish_complex.1} parent=15 // pred_check
        %p140 = pneg %p56
      $region22: #{mish_complex.1} parent=15 // pred_check_branch
        %142 = sbr.rel (%p140) target = $region24
      $region23: #{mish_complex.1} parent=15 // pred_region
        %p143 = scmp.lt.s32.totalorder %s10, 1
        %s144 = scalar_select %p143, %s10, 1
        %s145 = smul.addr %s144, 8
        %s146 = scalar_lea.vmem %s1, %s145
      $region24: #{mish_complex.1} parent=15 // pred_fallthru
        _
    $region16: #{mish_complex.1} parent=5 // pred_fallthru
      _
    %p147 = scmp.le.s32.totalorder 1, %s10
    %p148 = scmp.lt.s32.totalorder %s10, 3
    %p149 = pnand %p147, %p148
    %p150 = pneg %p149
    // Predicated region
    $region25: #{mish_complex.1} parent=5 // pred_check
      _
    $region26: #{mish_complex.1} parent=5 // pred_check_branch
      %152 = sbr.rel (%p149) target = $region28
    $region27: #{mish_complex.1} parent=5 // pred_region
      %s153 = ssub.s32 %s10, 1
      %p154 = scmp.lt.s32.totalorder %s15, 1
      %s155 = scalar_select %p154, %s15, 1
      %s156 = smul.addr %s155, 8
      %s157 = scalar_lea.vmem %s0, %s156
      %p158 = pneg %p36
      %p159 = pneg %p33
      %p160 = scmp.lt.s32.totalorder %s15, 1
      %s161 = scalar_select %p160, %s15, 1
      %s162 = smul.addr %s161, 8
      %s163 = scalar_lea.vmem %s1, %s162
      %p164 = pneg %p62
      %p165 = pneg %p59
      %p166 = pneg %p88
      %p167 = pneg %p85
      %p168 = scmp.lt.s32.totalorder %s15, 1
      %s169 = scalar_select %p168, %s15, 1
      %s170 = smul.addr %s169, 8
      %s171 = scalar_lea.vmem %s2, %s170
      %p172 = pneg %p114
      %p173 = pneg %p111
      %p174 = scmp.lt.s32.totalorder %s15, 1
      %s175 = scalar_select %p174, %s15, 1
      %s176 = smul.addr %s175, 8
      %s177 = scalar_lea.vmem %s3, %s176
      %p178 = scmp.lt.s32.totalorder %s15, 1
      %s179 = scalar_select %p178, %s15, 1
      %s180 = smul.addr %s179, 8
      %s181 = scalar_lea.vmem %s0, %s180
      %p182 = scmp.lt.s32.totalorder %s15, 1
      %s183 = scalar_select %p182, %s15, 1
      %s184 = smul.addr %s183, 8
      %s185 = scalar_lea.vmem %s1, %s184
      %p186 = scmp.lt.s32.totalorder %s15, 1
      %s187 = scalar_select %p186, %s15, 1
      %s188 = smul.addr %s187, 8
      %s189 = scalar_lea.vmem %s2, %s188
      %p190 = scmp.lt.s32.totalorder %s15, 1
      %s191 = scalar_select %p190, %s15, 1
      %s192 = smul.addr %s191, 8
      %s193 = scalar_lea.vmem %s3, %s192
      %v194 = vld [vmem:[%s181] sm:$0xff]
      %v195 = vand.u32 2147483647, %v194
      %v196 = vsub.f32 0.0, %v195
      %v197 = vmul.f32 %v196, 1.442695
      %v198 = vpow.pop %v197
      %v199 = vmul.f32 %v198, %v198
      %vm200 = vcmp.gt.f32.partialorder %v194, 0.0
      %v201 = vmul.f32 %v198, 2.0
      %v202 = vadd.f32 %v201, 1.0
      %v203 = vadd.f32 %v199, %v201
      %v204 = vsel %vm200, %v202, %v203
      %v205 = vmul.f32 %v199, 2.0
      %v206 = vadd.f32 %v205, %v201
      %v207 = vadd.f32 %v206, 1.0
      %v208 = vadd.f32 %v203, 2.0
      %v209 = vsel %vm200, %v207, %v208
      %v210 = vrcp.pop %v209
      %v211 = vmul.f32 %v204, %v210
      %v212 = vmul.f32 %v194, %v211
      %213 = vst [vmem:[%s189] sm:$0xff] %v212
      %v214 = vld [vmem:[%s185] sm:$0xff]
      %v215 = vand.u32 2147483647, %v214
      %v216 = vsub.f32 0.0, %v215
      %v217 = vmul.f32 %v216, 1.442695
      %v218 = vpow.pop %v217
      %v219 = vmul.f32 %v218, %v218
      %vm220 = vcmp.gt.f32.partialorder %v214, 0.0
      %v221 = vmul.f32 %v218, 2.0
      %v222 = vadd.f32 %v221, 1.0
      %v223 = vadd.f32 %v219, %v221
      %v224 = vsel %vm220, %v222, %v223
      %v225 = vmul.f32 %v219, 2.0
      %v226 = vadd.f32 %v225, %v221
      %v227 = vadd.f32 %v226, 1.0
      %v228 = vadd.f32 %v223, 2.0
      %v229 = vsel %vm220, %v227, %v228
      %v230 = vrcp.pop %v229
      %v231 = vmul.f32 %v224, %v230
      %v232 = vmul.f32 %v214, %v231
      %233 = vst [vmem:[%s193] sm:$0xff] %v232
      %p234 = scmp.lt.s32.totalorder %s15, 1
      %s235 = scalar_select %p234, %s15, 1
      %s236 = smul.addr %s235, 8
      %s237 = scalar_lea.vmem %s2, %s236
      %p238 = scmp.lt.s32.totalorder %s15, 1
      %s239 = scalar_select %p238, %s15, 1
      %s240 = smul.addr %s239, 8
      %s241 = scalar_lea.vmem %s3, %s240
      // Predicated region
      $region29: #{mish_complex.1} parent=27 // pred_check
        %p242 = pneg %p85
      $region30: #{mish_complex.1} parent=27 // pred_check_branch
        %244 = sbr.rel (%p242) target = $region32
      $region31: #{mish_complex.1} parent=27 // pred_region
        _
      $region32: #{mish_complex.1} parent=27 // pred_fallthru
        _
      // Predicated region
      $region33: #{mish_complex.1} parent=27 // pred_check
        %p245 = pneg %p111
      $region34: #{mish_complex.1} parent=27 // pred_check_branch
        %247 = sbr.rel (%p245) target = $region36
      $region35: #{mish_complex.1} parent=27 // pred_region
        _
      $region36: #{mish_complex.1} parent=27 // pred_fallthru
        _
    $region28: #{mish_complex.1} parent=5 // pred_fallthru
      _
    %p248 = scmp.le.s32.totalorder 2, %s10
    // Predicated region
    $region37: #{mish_complex.1} parent=5 // pred_check
      %p249 = pneg %p248
    $region38: #{mish_complex.1} parent=5 // pred_check_branch
      %251 = sbr.rel (%p249) target = $region40
    $region39: #{mish_complex.1} parent=5 // pred_region
      %s252 = ssub.s32 %s10, 2
      // Predicated region
      $region41: #{mish_complex.1} parent=39 // pred_check
        %p253 = pneg %p91
      $region42: #{mish_complex.1} parent=39 // pred_check_branch
        %255 = sbr.rel (%p253) target = $region44
      $region43: #{mish_complex.1} parent=39 // pred_region
        %p256 = scmp.lt.s32.totalorder %s16, 1
        %s257 = scalar_select %p256, %s16, 1
        %s258 = smul.addr %s257, 8
        %s259 = scalar_lea.vmem %s2, %s258
      $region44: #{mish_complex.1} parent=39 // pred_fallthru
        _
      // Predicated region
      $region45: #{mish_complex.1} parent=39 // pred_check
        %p260 = pneg %p117
      $region46: #{mish_complex.1} parent=39 // pred_check_branch
        %262 = sbr.rel (%p260) target = $region48
      $region47: #{mish_complex.1} parent=39 // pred_region
        %p263 = scmp.lt.s32.totalorder %s16, 1
        %s264 = scalar_select %p263, %s16, 1
        %s265 = smul.addr %s264, 8
        %s266 = scalar_lea.vmem %s3, %s265
      $region48: #{mish_complex.1} parent=39 // pred_fallthru
        _
    $region40: #{mish_complex.1} parent=5 // pred_fallthru
      _
  $region6: #{mish_complex.1} parent=0 // loop_footer
    %s14 = sadd.s32 1, %s10
  $region7: #{mish_complex.1} parent=0 // loop_footer_branch
    %9 = sbr.rel target = $region3
  $region8: #{mish_complex.1} parent=0 // loop_exit
    _

</llo_original>
